<compile_context>
chip_gen: v7x
topology: tpu7x:2x2x1
jax: 0.10.0
libtpu: 0.0.40
codegen_flags: <defaults>
</compile_context>

<pallas_src>
import functools

import jax
import jax.numpy as jnp
from jax.experimental import pallas as pl
from jax.experimental.pallas import tpu as pltpu


def _round_up(x, m):
    return (x + m - 1) // m * m


def _ncf_mlp_kernel(n_hidden, x_ref, *refs):
    """Fused feature-major NCF MLP forward for one batch tile.

    Per grid step:
      x_ref     : [2G, B_TILE] bf16  -- concat(user, item) embeddings, feature-major
      refs[:-1] : w0T, b0, (wiT, bi)*, w_out, b_out
                  wT   bf16 [out_pad, in_pad]   (pre-transposed)
                  b    f32  [out_pad, 1]
                  w_out f32 [H_last_pad, 1], b_out f32 [1, 1]
      refs[-1]  : o_ref f32 [1, B_TILE]  -- lane-dense sigmoid outputs
    """
    o_ref = refs[-1]
    wb = refs[:-1]

    # Layer 0: single K=2G dot (concat already fused into the input tile).
    w0 = wb[0][...]                                           # bf16 [H0_pad, 2G]
    b0 = wb[1][...]                                           # f32  [H0_pad, 1]
    h = jnp.dot(w0, x_ref[...], preferred_element_type=jnp.float32) + b0
    h = jnp.maximum(h, 0.0)                                   # f32 [H0_pad, B_TILE]

    # Remaining hidden layers: bf16 MXU inputs, f32 accumulate / elementwise.
    # Cast to bf16 right after the previous ReLU so the f32 copy dies early.
    idx = 2
    for _ in range(n_hidden - 1):
        h = h.astype(jnp.bfloat16)
        w = wb[idx][...]                                      # bf16 [Hi_pad, Hprev_pad]
        b = wb[idx + 1][...]                                  # f32  [Hi_pad, 1]
        idx += 2
        h = jnp.dot(w, h, preferred_element_type=jnp.float32) + b
        h = jnp.maximum(h, 0.0)

    # Output head (H_last -> 1): VPU multiply + sublane reduce; result is
    # already lane-dense as [1, B_TILE] -- no transpose, no N=1 MXU matmul.
    w_out = wb[idx][...]                                      # f32 [H_last_pad, 1]
    b_out = wb[idx + 1][...]                                  # f32 [1, 1]
    logits = jnp.sum(h * w_out, axis=0, keepdims=True) + b_out
    o_ref[...] = jax.nn.sigmoid(logits)                       # f32 [1, B_TILE]


def ncf_mlp_pallas(x_t, kernel_wb, *, b_tile):
    """Run the fused NCF MLP. x_t: [2G, B_pad] bf16 (feature-major).

    Returns the sigmoid outputs as an f32 [1, B_pad] lane-dense row.
    """
    twoG, B_pad = x_t.shape
    assert B_pad % b_tile == 0 and b_tile % 128 == 0, (B_pad, b_tile)
    n_hidden = (len(kernel_wb) - 2) // 2
    grid = (B_pad // b_tile,)

    # Streamed input: one lane-dense [2G, b_tile] tile per grid step
    # (double-buffered by the Pallas pipeline).
    in_specs = [pl.BlockSpec((twoG, b_tile), lambda i: (0, i))]
    # Weights / biases: full-array blocks, resident in VMEM across the grid.
    # (default-arg capture avoids the late-binding closure bug)
    # NOTE: these are still double-buffered by the pipeline; at <256 KiB total
    # that is irrelevant, but single-buffer them if hidden_units grow large.
    for op in kernel_wb:
        in_specs.append(pl.BlockSpec(op.shape, lambda i, nd=op.ndim: (0,) * nd))

    # Lane-dense output row: block (1, b_tile), last dim a multiple of 128.
    out_spec = pl.BlockSpec((1, b_tile), lambda i: (0, i))

    kernel = functools.partial(_ncf_mlp_kernel, n_hidden)

    # VMEM per step at b_tile=8192 (G=16, H=128): bf16 input 2x512 KiB +
    # h f32 4 MiB + h bf16 2 MiB + weights <256 KiB + output 2x32 KiB
    # => ~7 MiB, comfortably under the 32 MiB scoped limit on v5e/v6e/v7x.
    return pl.pallas_call(
        kernel,
        out_shape=jax.ShapeDtypeStruct((1, B_pad), jnp.float32),
        grid=grid,
        in_specs=in_specs,
        out_specs=out_spec,
        compiler_params=pltpu.CompilerParams(
            dimension_semantics=("parallel",),
            vmem_limit_bytes=32 * 1024 * 1024,
        ),
    )(x_t, *kernel_wb)


def _choose_tiling(B):
    """Pick (b_tile, B_pad) from the static batch size B.

    Large tiles amortize the ~0.35 us per-grid-step overhead; when possible we
    keep >= 2 grid steps so the "parallel" axis shards across both v7x
    TensorCores (costs only one extra tiny step on single-TC v5e/v6e).
    """
    B_pad0 = _round_up(max(B, 1), 128)
    if B_pad0 >= 256:
        b_tile = min(8192, _round_up((B_pad0 + 1) // 2, 128))
    else:
        b_tile = B_pad0
    B_pad = _round_up(B_pad0, b_tile)
    return b_tile, B_pad


@jax.jit
def _ncf_forward(params, user_input, item_input):
    B = user_input.shape[0]
    b_tile, B_pad = _choose_tiling(B)
    # Pad the index vectors (not the gathered rows) so the gather itself emits
    # the padded activations; extra rows gather row 0 and are sliced off.
    ui = jnp.pad(user_input, (0, B_pad - B))
    ii = jnp.pad(item_input, (0, B_pad - B))
    # TODO(synk): for production-sized tables, fuse this gather into the kernel
    # (PrefetchScalarGridSpec + batched row DMA) to avoid the [2G, B_pad] HBM
    # round trip; at these sizes the XLA gather + transpose fuse fine under jit.
    x = jnp.concatenate(
        [params["user_embedding"][ui], params["item_embedding"][ii]], axis=-1)
    x_t = x.T.astype(jnp.bfloat16)                            # [2G, B_pad] bf16
    out_row = ncf_mlp_pallas(x_t, params["kernel_wb"], b_tile=b_tile)
    return out_row[0, :B][:, None]                            # [B, 1] f32


class NCFModelPallas:
    """Deterministically-initialized JAX/Pallas port of the PyTorch NCFModel."""

    def __init__(self, num_users, num_items, general_dim, hidden_units, key):
        hidden_units = list(hidden_units)
        n_linear = len(hidden_units) + 1
        keys = jax.random.split(key, 2 + 2 * n_linear)
        k = iter(keys)

        # nn.Embedding default init ~ N(0, 1).
        self.user_embedding = jax.random.normal(
            next(k), (num_users, general_dim), dtype=jnp.float32)
        self.item_embedding = jax.random.normal(
            next(k), (num_items, general_dim), dtype=jnp.float32)

        # nn.Linear default init: kaiming_uniform(a=sqrt(5)) for W and
        # U(+-1/sqrt(fan_in)) for b -- both reduce to U(+-1/sqrt(fan_in)).
        dims = [general_dim * 2] + hidden_units + [1]
        self.weights, self.biases = [], []
        for d_in, d_out in zip(dims[:-1], dims[1:]):
            bound = 1.0 / float(d_in) ** 0.5
            w = jax.random.uniform(next(k), (d_in, d_out), jnp.float32, -bound, bound)
            b = jax.random.uniform(next(k), (1, d_out), jnp.float32, -bound, bound)
            self.weights.append(w)
            self.biases.append(b)

        # ---- Pre-packed kernel parameters: feature-major (pre-transposed),
        # ---- hidden dims zero-padded to multiples of 128, bf16 hidden weights.
        G = general_dim
        hu = hidden_units
        hp = [_round_up(h, 128) for h in hu]

        w0t = jnp.zeros((hp[0], 2 * G), jnp.float32).at[:hu[0], :].set(self.weights[0].T)
        b0t = jnp.zeros((hp[0], 1), jnp.float32).at[:hu[0], :].set(self.biases[0].T)
        kernel_wb = [w0t.astype(jnp.bfloat16), b0t]
        for li in range(1, len(hu)):
            wt = jnp.zeros((hp[li], hp[li - 1]), jnp.float32)
            wt = wt.at[:hu[li], :hu[li - 1]].set(self.weights[li].T)
            bt = jnp.zeros((hp[li], 1), jnp.float32).at[:hu[li], :].set(self.biases[li].T)
            kernel_wb += [wt.astype(jnp.bfloat16), bt]
        w_out = jnp.zeros((hp[-1], 1), jnp.float32).at[:hu[-1], :].set(self.weights[-1])
        kernel_wb += [w_out, self.biases[-1]]                 # head stays f32 (VPU path)

        self.params = {
            "user_embedding": self.user_embedding,
            "item_embedding": self.item_embedding,
            "kernel_wb": tuple(kernel_wb),
        }

    def __call__(self, user_input, item_input):
        return _ncf_forward(self.params, user_input, item_input)


def ncf_reference(model, user_input, item_input):
    """Pure-JAX forward mirroring the kernel math (bf16 matmul in, f32 accumulate)."""
    u = model.user_embedding[user_input]
    v = model.item_embedding[item_input]
    h = jnp.concatenate([u, v], axis=-1).astype(jnp.bfloat16)      # [B, 2G]
    h = jnp.dot(h, model.weights[0].astype(jnp.bfloat16),
                preferred_element_type=jnp.float32) + model.biases[0]
    h = jnp.maximum(h, 0.0)
    for w, b in zip(model.weights[1:-1], model.biases[1:-1]):
        h = jnp.dot(h.astype(jnp.bfloat16), w.astype(jnp.bfloat16),
                    preferred_element_type=jnp.float32) + b
        h = jnp.maximum(h, 0.0)
    # Output head in exact f32 (same as the kernel's VPU+reduce path).
    logits = jnp.sum(h * model.weights[-1][:, 0], axis=-1, keepdims=True) \
        + model.biases[-1]
    return jax.nn.sigmoid(logits)


if __name__ == "__main__":
    key = jax.random.PRNGKey(0)
    k_model, k_user, k_item, k_user2, k_item2 = jax.random.split(key, 5)

    num_users = 64
    num_items = 48
    general_dim = 16
    hidden_units = [32, 16]

    model = NCFModelPallas(num_users, num_items, general_dim, hidden_units, k_model)

    # Small batch (single grid step).
    batch = 8
    user_input = jax.random.randint(k_user, (batch,), 0, num_users, dtype=jnp.int32)
    item_input = jax.random.randint(k_item, (batch,), 0, num_items, dtype=jnp.int32)
    out = jax.block_until_ready(model(user_input, item_input))
    ref = ncf_reference(model, user_input, item_input)
    assert out.shape == (batch, 1), out.shape
    assert jnp.allclose(out, ref, atol=1e-3, rtol=1e-3), (out, ref)

    # Larger, non-multiple batch (exercises >= 2 grid steps + row padding).
    batch2 = 300
    user_input2 = jax.random.randint(k_user2, (batch2,), 0, num_users, dtype=jnp.int32)
    item_input2 = jax.random.randint(k_item2, (batch2,), 0, num_items, dtype=jnp.int32)
    out2 = jax.block_until_ready(model(user_input2, item_input2))
    ref2 = ncf_reference(model, user_input2, item_input2)
    assert out2.shape == (batch2, 1), out2.shape
    assert jnp.allclose(out2, ref2, atol=1e-3, rtol=1e-3), (out2, ref2)

    print("KERNEL_OK")
</pallas_src>

<mosaic_0001>
module attributes {stable_mosaic.version = 11 : i64} {
  func.func @_ncf_mlp_kernel(%arg0: i32, %arg1: memref<32x128xbf16, #tpu.memory_space<vmem>>, %arg2: memref<128x32xbf16, #tpu.memory_space<vmem>>, %arg3: memref<128x1xf32, #tpu.memory_space<vmem>>, %arg4: memref<128x128xbf16, #tpu.memory_space<vmem>>, %arg5: memref<128x1xf32, #tpu.memory_space<vmem>>, %arg6: memref<128x1xf32, #tpu.memory_space<vmem>>, %arg7: memref<1x1xf32, #tpu.memory_space<vmem>>, %arg8: memref<1x128xf32, #tpu.memory_space<vmem>>) attributes {dimension_semantics = [#tpu.dimension_semantics<parallel>], iteration_bounds = array<i64: 1>, scalar_prefetch = 0 : i64, scratch_operands = 0 : i64, tpu.core_type = #tpu.core_type<tc>, window_params = [{transform_indices = @transform_0, window_bounds = array<i64: 32, 128>}, {pipeline_mode = #tpu.pipeline_mode<synchronous>, transform_indices = @transform_1, window_bounds = array<i64: 128, 32>}, {pipeline_mode = #tpu.pipeline_mode<synchronous>, transform_indices = @transform_2, window_bounds = array<i64: 128, 1>}, {pipeline_mode = #tpu.pipeline_mode<synchronous>, transform_indices = @transform_3, window_bounds = array<i64: 128, 128>}, {pipeline_mode = #tpu.pipeline_mode<synchronous>, transform_indices = @transform_4, window_bounds = array<i64: 128, 1>}, {pipeline_mode = #tpu.pipeline_mode<synchronous>, transform_indices = @transform_5, window_bounds = array<i64: 128, 1>}, {pipeline_mode = #tpu.pipeline_mode<synchronous>, transform_indices = @transform_6, window_bounds = array<i64: 1, 1>}, {transform_indices = @transform_7, window_bounds = array<i64: 1, 128>}]} {
    %c0 = arith.constant 0 : index
    %c0_0 = arith.constant 0 : index
    %0 = vector.load %arg2[%c0, %c0_0] : memref<128x32xbf16, #tpu.memory_space<vmem>>, vector<128x32xbf16>
    %c0_1 = arith.constant 0 : index
    %c0_2 = arith.constant 0 : index
    %1 = vector.load %arg3[%c0_1, %c0_2] : memref<128x1xf32, #tpu.memory_space<vmem>>, vector<128x1xf32>
    %c0_3 = arith.constant 0 : index
    %c0_4 = arith.constant 0 : index
    %2 = vector.load %arg1[%c0_3, %c0_4] : memref<32x128xbf16, #tpu.memory_space<vmem>>, vector<32x128xbf16>
    %cst = arith.constant dense<0.000000e+00> : vector<128x128xf32>
    %3 = tpu.matmul %0, %2, %cst {dimension_numbers = #tpu.dot_dimension_numbers<[1], [0], [0], [1], [0, 0, 1, 1], [], []>} : vector<128x32xbf16>, vector<32x128xbf16>, vector<128x128xf32> -> vector<128x128xf32>
    %4 = vector.broadcast %1 : vector<128x1xf32> to vector<128x128xf32>
    %5 = arith.addf %3, %4 : vector<128x128xf32>
    %cst_5 = arith.constant 0.000000e+00 : f32
    %6 = vector.broadcast %cst_5 : f32 to vector<128x128xf32>
    %7 = arith.maximumf %5, %6 : vector<128x128xf32>
    %8 = arith.truncf %7 : vector<128x128xf32> to vector<128x128xbf16>
    %c0_6 = arith.constant 0 : index
    %c0_7 = arith.constant 0 : index
    %9 = vector.load %arg4[%c0_6, %c0_7] : memref<128x128xbf16, #tpu.memory_space<vmem>>, vector<128x128xbf16>
    %c0_8 = arith.constant 0 : index
    %c0_9 = arith.constant 0 : index
    %10 = vector.load %arg5[%c0_8, %c0_9] : memref<128x1xf32, #tpu.memory_space<vmem>>, vector<128x1xf32>
    %cst_10 = arith.constant dense<0.000000e+00> : vector<128x128xf32>
    %11 = tpu.matmul %9, %8, %cst_10 {dimension_numbers = #tpu.dot_dimension_numbers<[1], [0], [0], [1], [0, 0, 1, 1], [], []>} : vector<128x128xbf16>, vector<128x128xbf16>, vector<128x128xf32> -> vector<128x128xf32>
    %12 = vector.broadcast %10 : vector<128x1xf32> to vector<128x128xf32>
    %13 = arith.addf %11, %12 : vector<128x128xf32>
    %cst_11 = arith.constant 0.000000e+00 : f32
    %14 = vector.broadcast %cst_11 : f32 to vector<128x128xf32>
    %15 = arith.maximumf %13, %14 : vector<128x128xf32>
    %c0_12 = arith.constant 0 : index
    %c0_13 = arith.constant 0 : index
    %16 = vector.load %arg6[%c0_12, %c0_13] : memref<128x1xf32, #tpu.memory_space<vmem>>, vector<128x1xf32>
    %c0_14 = arith.constant 0 : index
    %c0_15 = arith.constant 0 : index
    %17 = vector.load %arg7[%c0_14, %c0_15] : memref<1x1xf32, #tpu.memory_space<vmem>>, vector<1x1xf32>
    %18 = vector.broadcast %16 : vector<128x1xf32> to vector<128x128xf32>
    %19 = arith.mulf %15, %18 : vector<128x128xf32>
    %cst_16 = arith.constant dense<0.000000e+00> : vector<128xf32>
    %20 = vector.multi_reduction <add>, %19, %cst_16 [0] : vector<128x128xf32> to vector<128xf32>
    %21 = vector.shape_cast %20 : vector<128xf32> to vector<1x128xf32>
    %22 = vector.broadcast %17 : vector<1x1xf32> to vector<1x128xf32>
    %23 = arith.addf %21, %22 : vector<1x128xf32>
    %24 = arith.negf %23 : vector<1x128xf32>
    %25 = math.exp %24 : vector<1x128xf32>
    %cst_17 = arith.constant 1.000000e+00 : f32
    %26 = vector.broadcast %cst_17 : f32 to vector<1x128xf32>
    %27 = arith.addf %26, %25 : vector<1x128xf32>
    %28 = arith.divf %26, %27 : vector<1x128xf32>
    %c0_18 = arith.constant 0 : index
    %c0_19 = arith.constant 0 : index
    %29 = vector.load %arg8[%c0_18, %c0_19] : memref<1x128xf32, #tpu.memory_space<vmem>>, vector<1x128xf32>
    tpu.vector_store %arg8[%c0_18, %c0_19], %28 {strides = array<i32>} : memref<1x128xf32, #tpu.memory_space<vmem>>, vector<1x128xf32>,
    return
  }
  func.func @transform_0(%arg0: i32) -> (i32, i32) {
    %c0_i32 = arith.constant 0 : i32
    %c0_i32_0 = arith.constant 0 : i32
    return %c0_i32, %arg0 : i32, i32
  }
  func.func @transform_1(%arg0: i32) -> (i32, i32) {
    %c0_i32 = arith.constant 0 : i32
    %c0_i32_0 = arith.constant 0 : i32
    %c0_i32_1 = arith.constant 0 : i32
    return %c0_i32, %c0_i32_0 : i32, i32
  }
  func.func @transform_2(%arg0: i32) -> (i32, i32) {
    %c0_i32 = arith.constant 0 : i32
    %c0_i32_0 = arith.constant 0 : i32
    %c0_i32_1 = arith.constant 0 : i32
    return %c0_i32, %c0_i32_0 : i32, i32
  }
  func.func @transform_3(%arg0: i32) -> (i32, i32) {
    %c0_i32 = arith.constant 0 : i32
    %c0_i32_0 = arith.constant 0 : i32
    %c0_i32_1 = arith.constant 0 : i32
    return %c0_i32, %c0_i32_0 : i32, i32
  }
  func.func @transform_4(%arg0: i32) -> (i32, i32) {
    %c0_i32 = arith.constant 0 : i32
    %c0_i32_0 = arith.constant 0 : i32
    %c0_i32_1 = arith.constant 0 : i32
    return %c0_i32, %c0_i32_0 : i32, i32
  }
  func.func @transform_5(%arg0: i32) -> (i32, i32) {
    %c0_i32 = arith.constant 0 : i32
    %c0_i32_0 = arith.constant 0 : i32
    %c0_i32_1 = arith.constant 0 : i32
    return %c0_i32, %c0_i32_0 : i32, i32
  }
  func.func @transform_6(%arg0: i32) -> (i32, i32) {
    %c0_i32 = arith.constant 0 : i32
    %c0_i32_0 = arith.constant 0 : i32
    %c0_i32_1 = arith.constant 0 : i32
    return %c0_i32, %c0_i32_0 : i32, i32
  }
  func.func @transform_7(%arg0: i32) -> (i32, i32) {
    %c0_i32 = arith.constant 0 : i32
    %c0_i32_0 = arith.constant 0 : i32
    return %c0_i32, %arg0 : i32, i32
  }
}

</mosaic_0001>

<llo_original>
// kernel: _ncf_forward.1
$region0: #{_ncf_forward.1}
  #allocation0 [shape = 'u32[]', space=smem, size = 0x4, offset = 0x4, fixed_abs, tag = 'smem constant byte address 0x4 - core index']
  #allocation1 [shape = 'u32[144,128]{1,0:T(1,128)}', space=vmem, size = 0x12000, scoped, tag = 'internal scratch']
  #allocation2 [shape = 'f32[1,1]{1,0:T(1,128)S(1)}', space=vmem, size = 0x200, scoped, tag = 'scoped memory for _ncf_forward.1']
  %s0 = inlined_call_operand.vmem [shape: bf16[32,128], index: 0, kind: input, shape index: {}]
  %s1 = inlined_call_operand.vmem [shape: bf16[128,32], index: 1, kind: input, shape index: {}]
  %s2 = inlined_call_operand.vmem [shape: f32[128,1], index: 2, kind: input, shape index: {}]
  %s3 = inlined_call_operand.vmem [shape: bf16[128,128], index: 3, kind: input, shape index: {}]
  %s4 = inlined_call_operand.vmem [shape: f32[128,1], index: 4, kind: input, shape index: {}]
  %s5 = inlined_call_operand.vmem [shape: f32[128,1], index: 5, kind: input, shape index: {}]
  %s6 = inlined_call_operand.<no memory space> [shape: f32[1,1], index: 6, kind: input, shape index: {}]
  %s7 = inlined_call_operand.vmem [shape: f32[1,128], index: 7, kind: output, shape index: {}]
  %s8 = sld [smem:[#allocation0]]
  $region38: #{_ncf_forward.1} parent=0
    _
  %s10 = ssub.s32 1, %s8
  %s11 = scalar_select 0, %s10, %s8
  %v12 = vstv %s6
  %13 = vst [vmem:[#allocation2] sm:$0x1] %v12
  // Predicated region
  $region2: #{_ncf_forward.1} parent=0 // pred_check
    _
  $region3: #{_ncf_forward.1} parent=0 // pred_check_branch
    %15 = sbr.rel (0) target = $region5
  $region4: #{_ncf_forward.1} parent=0 // pred_region
    _
  $region5: #{_ncf_forward.1} parent=0 // pred_fallthru
    _
  // Predicated region
  $region6: #{_ncf_forward.1} parent=0 // pred_check
    _
  $region7: #{_ncf_forward.1} parent=0 // pred_check_branch
    %17 = sbr.rel (0) target = $region9
  $region8: #{_ncf_forward.1} parent=0 // pred_region
    _
  $region9: #{_ncf_forward.1} parent=0 // pred_fallthru
    _
  // Predicated region
  $region10: #{_ncf_forward.1} parent=0 // pred_check
    _
  $region11: #{_ncf_forward.1} parent=0 // pred_check_branch
    %19 = sbr.rel (0) target = $region13
  $region12: #{_ncf_forward.1} parent=0 // pred_region
    _
  $region13: #{_ncf_forward.1} parent=0 // pred_fallthru
    _
  // Predicated region
  $region14: #{_ncf_forward.1} parent=0 // pred_check
    _
  $region15: #{_ncf_forward.1} parent=0 // pred_check_branch
    %21 = sbr.rel (0) target = $region17
  $region16: #{_ncf_forward.1} parent=0 // pred_region
    _
  $region17: #{_ncf_forward.1} parent=0 // pred_fallthru
    _
  // Predicated region
  $region18: #{_ncf_forward.1} parent=0 // pred_check
    _
  $region19: #{_ncf_forward.1} parent=0 // pred_check_branch
    %23 = sbr.rel (0) target = $region21
  $region20: #{_ncf_forward.1} parent=0 // pred_region
    _
  $region21: #{_ncf_forward.1} parent=0 // pred_fallthru
    _
  // Predicated region
  $region22: #{_ncf_forward.1} parent=0 // pred_check
    _
  $region23: #{_ncf_forward.1} parent=0 // pred_check_branch
    %25 = sbr.rel (0) target = $region25
  $region24: #{_ncf_forward.1} parent=0 // pred_region
    _
  $region25: #{_ncf_forward.1} parent=0 // pred_fallthru
    _
  // Predicated region
  $region26: #{_ncf_forward.1} parent=0 // pred_check
    _
  $region27: #{_ncf_forward.1} parent=0 // pred_check_branch
    %27 = sbr.rel (0) target = $region29
  $region28: #{_ncf_forward.1} parent=0 // pred_region
    _
  $region29: #{_ncf_forward.1} parent=0 // pred_fallthru
    _
  %v29 = vld [vmem:[%s1] sm:$0xf]
  %v30 = vld [vmem:[%s1 + $0x4] sm:$0xf]
  %v31 = vld [vmem:[%s1 + $0x8] sm:$0xf]
  %v32 = vld [vmem:[%s1 + $0xc] sm:$0xf]
  %v33 = vld [vmem:[%s1 + $0x10] sm:$0xf]
  %v34 = vld [vmem:[%s1 + $0x14] sm:$0xf]
  %v35 = vld [vmem:[%s1 + $0x18] sm:$0xf]
  %v36 = vld [vmem:[%s1 + $0x1c] sm:$0xf]
  %v37 = vld [vmem:[%s1 + $0x20] sm:$0xf]
  %v38 = vld [vmem:[%s1 + $0x24] sm:$0xf]
  %v39 = vld [vmem:[%s1 + $0x28] sm:$0xf]
  %v40 = vld [vmem:[%s1 + $0x2c] sm:$0xf]
  %v41 = vld [vmem:[%s1 + $0x30] sm:$0xf]
  %v42 = vld [vmem:[%s1 + $0x34] sm:$0xf]
  %v43 = vld [vmem:[%s1 + $0x38] sm:$0xf]
  %v44 = vld [vmem:[%s1 + $0x3c] sm:$0xf]
  %v45 = vld [vmem:[%s2] sm:$0xff]
  %v46 = vld [vmem:[%s2 + $0x8] sm:$0xff]
  %v47 = vld [vmem:[%s2 + $0x10] sm:$0xff]
  %v48 = vld [vmem:[%s2 + $0x18] sm:$0xff]
  %v49 = vld [vmem:[%s2 + $0x20] sm:$0xff]
  %v50 = vld [vmem:[%s2 + $0x28] sm:$0xff]
  %v51 = vld [vmem:[%s2 + $0x30] sm:$0xff]
  %v52 = vld [vmem:[%s2 + $0x38] sm:$0xff]
  %v53 = vld [vmem:[%s2 + $0x40] sm:$0xff]
  %v54 = vld [vmem:[%s2 + $0x48] sm:$0xff]
  %v55 = vld [vmem:[%s2 + $0x50] sm:$0xff]
  %v56 = vld [vmem:[%s2 + $0x58] sm:$0xff]
  %v57 = vld [vmem:[%s2 + $0x60] sm:$0xff]
  %v58 = vld [vmem:[%s2 + $0x68] sm:$0xff]
  %v59 = vld [vmem:[%s2 + $0x70] sm:$0xff]
  %v60 = vld [vmem:[%s2 + $0x78] sm:$0xff]
  %v61 = vld [vmem:[%s0] sm:$0xf]
  %v62 = vld [vmem:[%s0 + $0x4] sm:$0xf]
  %v63 = vld [vmem:[%s0 + $0x8] sm:$0xf]
  %v64 = vld [vmem:[%s0 + $0xc] sm:$0xf]
  %66 = vset.pattern.permute.xlu0 0
  %67 = vperm.xlu0 %66, %v45
  %v68 = vpop.permute.xlu0 %67
  %71 = vset.pattern.permute.xlu0 0
  %72 = vperm.xlu0 %71, %v46
  %v73 = vpop.permute.xlu0 %72
  %76 = vset.pattern.permute.xlu0 0
  %77 = vperm.xlu0 %76, %v47
  %v78 = vpop.permute.xlu0 %77
  %81 = vset.pattern.permute.xlu0 0
  %82 = vperm.xlu0 %81, %v48
  %v83 = vpop.permute.xlu0 %82
  %86 = vset.pattern.permute.xlu0 0
  %87 = vperm.xlu0 %86, %v49
  %v88 = vpop.permute.xlu0 %87
  %91 = vset.pattern.permute.xlu0 0
  %92 = vperm.xlu0 %91, %v50
  %v93 = vpop.permute.xlu0 %92
  %96 = vset.pattern.permute.xlu0 0
  %97 = vperm.xlu0 %96, %v51
  %v98 = vpop.permute.xlu0 %97
  %101 = vset.pattern.permute.xlu0 0
  %102 = vperm.xlu0 %101, %v52
  %v103 = vpop.permute.xlu0 %102
  %106 = vset.pattern.permute.xlu0 0
  %107 = vperm.xlu0 %106, %v53
  %v108 = vpop.permute.xlu0 %107
  %111 = vset.pattern.permute.xlu0 0
  %112 = vperm.xlu0 %111, %v54
  %v113 = vpop.permute.xlu0 %112
  %116 = vset.pattern.permute.xlu0 0
  %117 = vperm.xlu0 %116, %v55
  %v118 = vpop.permute.xlu0 %117
  %121 = vset.pattern.permute.xlu0 0
  %122 = vperm.xlu0 %121, %v56
  %v123 = vpop.permute.xlu0 %122
  %126 = vset.pattern.permute.xlu0 0
  %127 = vperm.xlu0 %126, %v57
  %v128 = vpop.permute.xlu0 %127
  %131 = vset.pattern.permute.xlu0 0
  %132 = vperm.xlu0 %131, %v58
  %v133 = vpop.permute.xlu0 %132
  %136 = vset.pattern.permute.xlu0 0
  %137 = vperm.xlu0 %136, %v59
  %v138 = vpop.permute.xlu0 %137
  %141 = vset.pattern.permute.xlu0 0
  %142 = vperm.xlu0 %141, %v60
  %v143 = vpop.permute.xlu0 %142
  %v161 = vunpack.c.l.b16 %v29
  %v162 = vunpack.c.l.b16 %v30
  %v163 = vunpack.c.l.b16 %v31
  %v164 = vunpack.c.l.b16 %v32
  %v165 = vunpack.c.l.b16 %v33
  %v166 = vunpack.c.l.b16 %v34
  %v167 = vunpack.c.l.b16 %v35
  %v168 = vunpack.c.l.b16 %v36
  %v169 = vunpack.c.l.b16 %v37
  %v170 = vunpack.c.l.b16 %v38
  %v171 = vunpack.c.l.b16 %v39
  %v172 = vunpack.c.l.b16 %v40
  %v173 = vunpack.c.l.b16 %v41
  %v174 = vunpack.c.l.b16 %v42
  %v175 = vunpack.c.l.b16 %v43
  %v176 = vunpack.c.l.b16 %v44
  %v177 = vpack.c.b16 %v162, %v161
  %v178 = vpack.c.b16 %v164, %v163
  %v179 = vpack.c.b16 %v166, %v165
  %v180 = vpack.c.b16 %v168, %v167
  %v181 = vpack.c.b16 %v170, %v169
  %v182 = vpack.c.b16 %v172, %v171
  %v183 = vpack.c.b16 %v174, %v173
  %v184 = vpack.c.b16 %v176, %v175
  %v189 = vunpack.c.l.b16 %v61
  %v190 = vunpack.c.l.b16 %v62
  %v191 = vunpack.c.l.b16 %v63
  %v192 = vunpack.c.l.b16 %v64
  %v193 = vpack.c.b16 %v190, %v189
  %v194 = vpack.c.b16 %v192, %v191
  %vm197 = vcmask 261120
  %v199 = vsel %vm197, %v177, 0
  %v202 = vsel %vm197, %v178, 0
  %v205 = vsel %vm197, %v179, 0
  %v208 = vsel %vm197, %v180, 0
  %v211 = vsel %vm197, %v181, 0
  %v214 = vsel %vm197, %v182, 0
  %v217 = vsel %vm197, %v183, 0
  %v220 = vsel %vm197, %v184, 0
  %222 = vmatprep.subr.bf16.mxu0 0
  %223 = vmatpush1.bf16.msra.mxu0 %v193
  %224 = vmatprep.subr.bf16.mxu0 0
  %225 = vmatpush1.bf16.msra.mxu0 %v194
  %226 = vmatprep.subr.bf16.mxu0 0
  %227 = vmatpush1.bf16.msra.mxu0 0
  %228 = vmatprep.subr.bf16.mxu0 0
  %229 = vmatpush1.bf16.msra.mxu0 0
  %230 = vmatprep.subr.bf16.mxu0 0
  %231 = vmatpush1.bf16.msra.mxu0 0
  %232 = vmatprep.subr.bf16.mxu0 0
  %233 = vmatpush1.bf16.msra.mxu0 0
  %234 = vmatprep.subr.bf16.mxu0 0
  %235 = vmatpush1.bf16.msra.mxu0 0
  %236 = vmatprep.subr.bf16.mxu0 0
  %237 = vmatpush1.bf16.msra.mxu0 0
  %238 = vmatprep.subr.bf16.mxu0 0
  %239 = vmatpush1.bf16.msra.mxu0 0
  %240 = vmatprep.subr.bf16.mxu0 0
  %241 = vmatpush1.bf16.msra.mxu0 0
  %242 = vmatprep.subr.bf16.mxu0 0
  %243 = vmatpush1.bf16.msra.mxu0 0
  %244 = vmatprep.subr.bf16.mxu0 0
  %245 = vmatpush1.bf16.msra.mxu0 0
  %246 = vmatprep.subr.bf16.mxu0 0
  %247 = vmatpush1.bf16.msra.mxu0 0
  %248 = vmatprep.subr.bf16.mxu0 0
  %249 = vmatpush1.bf16.msra.mxu0 0
  %250 = vmatprep.subr.bf16.mxu0 0
  %251 = vmatpush1.bf16.msra.mxu0 0
  %252 = vmatprep.subr.bf16.mxu0 0
  %253 = vmatpush1.bf16.msra.mxu0 0
  %254 = vmatprep.mubr.bf16.mxu0 0
  %255 = vmatmul.mubr.bf16.gmra.mrb[0].mxu0 %v199
  %v256 = vpop.f32.mrb[0].mxu0
  %v257 = vadd.f32 %v68, %v256
  %v258 = vpop.f32.mrb[0].mxu0
  %v259 = vpop.f32.mrb[0].mxu0
  %v260 = vadd.f32 %v73, %v259
  %v261 = vpop.f32.mrb[0].mxu0
  %262 = vmatprep.mubr.bf16.mxu0 0
  %263 = vmatmul.mubr.bf16.gmra.mrb[0].mxu0 %v202
  %v264 = vpop.f32.mrb[0].mxu0
  %v265 = vadd.f32 %v78, %v264
  %v266 = vpop.f32.mrb[0].mxu0
  %v267 = vpop.f32.mrb[0].mxu0
  %v268 = vadd.f32 %v83, %v267
  %v269 = vpop.f32.mrb[0].mxu0
  %270 = vmatprep.mubr.bf16.mxu0 0
  %271 = vmatmul.mubr.bf16.gmra.mrb[0].mxu0 %v205
  %v272 = vpop.f32.mrb[0].mxu0
  %v273 = vadd.f32 %v88, %v272
  %v274 = vpop.f32.mrb[0].mxu0
  %v275 = vpop.f32.mrb[0].mxu0
  %v276 = vadd.f32 %v93, %v275
  %v277 = vpop.f32.mrb[0].mxu0
  %278 = vmatprep.mubr.bf16.mxu0 0
  %279 = vmatmul.mubr.bf16.gmra.mrb[0].mxu0 %v208
  %v280 = vpop.f32.mrb[0].mxu0
  %v281 = vadd.f32 %v98, %v280
  %v282 = vpop.f32.mrb[0].mxu0
  %v283 = vpop.f32.mrb[0].mxu0
  %v284 = vadd.f32 %v103, %v283
  %v285 = vpop.f32.mrb[0].mxu0
  %286 = vmatprep.mubr.bf16.mxu0 0
  %287 = vmatmul.mubr.bf16.gmra.mrb[0].mxu0 %v211
  %v288 = vpop.f32.mrb[0].mxu0
  %v289 = vadd.f32 %v108, %v288
  %v290 = vpop.f32.mrb[0].mxu0
  %v291 = vpop.f32.mrb[0].mxu0
  %v292 = vadd.f32 %v113, %v291
  %v293 = vpop.f32.mrb[0].mxu0
  %294 = vmatprep.mubr.bf16.mxu0 0
  %295 = vmatmul.mubr.bf16.gmra.mrb[0].mxu0 %v214
  %v296 = vpop.f32.mrb[0].mxu0
  %v297 = vadd.f32 %v118, %v296
  %v298 = vpop.f32.mrb[0].mxu0
  %v299 = vpop.f32.mrb[0].mxu0
  %v300 = vadd.f32 %v123, %v299
  %v301 = vpop.f32.mrb[0].mxu0
  %302 = vmatprep.mubr.bf16.mxu0 0
  %303 = vmatmul.mubr.bf16.gmra.mrb[0].mxu0 %v217
  %v304 = vpop.f32.mrb[0].mxu0
  %v305 = vadd.f32 %v128, %v304
  %v306 = vpop.f32.mrb[0].mxu0
  %v307 = vpop.f32.mrb[0].mxu0
  %v308 = vadd.f32 %v133, %v307
  %v309 = vpop.f32.mrb[0].mxu0
  %310 = vmatprep.mubr.bf16.mxu0 0
  %311 = vmatmul.mubr.bf16.gmra.mrb[0].mxu0 %v220
  %v312 = vpop.f32.mrb[0].mxu0
  %v313 = vadd.f32 %v138, %v312
  %v314 = vpop.f32.mrb[0].mxu0
  %v315 = vpop.f32.mrb[0].mxu0
  %v316 = vadd.f32 %v143, %v315
  %v317 = vpop.f32.mrb[0].mxu0
  %318 = vdwg.mxu0
  %v319 = vmax.f32 %v257, 0.0
  %v320 = vmax.f32 %v260, 0.0
  %v321 = vmax.f32 %v265, 0.0
  %v322 = vmax.f32 %v268, 0.0
  %v323 = vmax.f32 %v273, 0.0
  %v324 = vmax.f32 %v276, 0.0
  %v325 = vmax.f32 %v281, 0.0
  %v326 = vmax.f32 %v284, 0.0
  %v327 = vmax.f32 %v289, 0.0
  %v328 = vmax.f32 %v292, 0.0
  %v329 = vmax.f32 %v297, 0.0
  %v330 = vmax.f32 %v300, 0.0
  %v331 = vmax.f32 %v305, 0.0
  %v332 = vmax.f32 %v308, 0.0
  %v333 = vmax.f32 %v313, 0.0
  %v334 = vmax.f32 %v316, 0.0
  %v335 = vpack.c.bf16 %v320, %v319
  %v336 = vpack.c.bf16 %v322, %v321
  %v337 = vpack.c.bf16 %v324, %v323
  %v338 = vpack.c.bf16 %v326, %v325
  %v339 = vpack.c.bf16 %v328, %v327
  %v340 = vpack.c.bf16 %v330, %v329
  %v341 = vpack.c.bf16 %v332, %v331
  %v342 = vpack.c.bf16 %v334, %v333
  %v343 = vld [vmem:[%s3] sm:$0xf]
  %v344 = vld [vmem:[%s3 + $0x4] sm:$0xf]
  %v345 = vld [vmem:[%s3 + $0x8] sm:$0xf]
  %v346 = vld [vmem:[%s3 + $0xc] sm:$0xf]
  %v347 = vld [vmem:[%s3 + $0x10] sm:$0xf]
  %v348 = vld [vmem:[%s3 + $0x14] sm:$0xf]
  %v349 = vld [vmem:[%s3 + $0x18] sm:$0xf]
  %v350 = vld [vmem:[%s3 + $0x1c] sm:$0xf]
  %v351 = vld [vmem:[%s3 + $0x20] sm:$0xf]
  %v352 = vld [vmem:[%s3 + $0x24] sm:$0xf]
  %v353 = vld [vmem:[%s3 + $0x28] sm:$0xf]
  %v354 = vld [vmem:[%s3 + $0x2c] sm:$0xf]
  %v355 = vld [vmem:[%s3 + $0x30] sm:$0xf]
  %v356 = vld [vmem:[%s3 + $0x34] sm:$0xf]
  %v357 = vld [vmem:[%s3 + $0x38] sm:$0xf]
  %v358 = vld [vmem:[%s3 + $0x3c] sm:$0xf]
  %v359 = vld [vmem:[%s4] sm:$0xff]
  %v360 = vld [vmem:[%s4 + $0x8] sm:$0xff]
  %v361 = vld [vmem:[%s4 + $0x10] sm:$0xff]
  %v362 = vld [vmem:[%s4 + $0x18] sm:$0xff]
  %v363 = vld [vmem:[%s4 + $0x20] sm:$0xff]
  %v364 = vld [vmem:[%s4 + $0x28] sm:$0xff]
  %v365 = vld [vmem:[%s4 + $0x30] sm:$0xff]
  %v366 = vld [vmem:[%s4 + $0x38] sm:$0xff]
  %v367 = vld [vmem:[%s4 + $0x40] sm:$0xff]
  %v368 = vld [vmem:[%s4 + $0x48] sm:$0xff]
  %v369 = vld [vmem:[%s4 + $0x50] sm:$0xff]
  %v370 = vld [vmem:[%s4 + $0x58] sm:$0xff]
  %v371 = vld [vmem:[%s4 + $0x60] sm:$0xff]
  %v372 = vld [vmem:[%s4 + $0x68] sm:$0xff]
  %v373 = vld [vmem:[%s4 + $0x70] sm:$0xff]
  %v374 = vld [vmem:[%s4 + $0x78] sm:$0xff]
  %376 = vset.pattern.permute.xlu0 0
  %377 = vperm.xlu0 %376, %v359
  %v378 = vpop.permute.xlu0 %377
  %381 = vset.pattern.permute.xlu0 0
  %382 = vperm.xlu0 %381, %v360
  %v383 = vpop.permute.xlu0 %382
  %386 = vset.pattern.permute.xlu0 0
  %387 = vperm.xlu0 %386, %v361
  %v388 = vpop.permute.xlu0 %387
  %391 = vset.pattern.permute.xlu0 0
  %392 = vperm.xlu0 %391, %v362
  %v393 = vpop.permute.xlu0 %392
  %396 = vset.pattern.permute.xlu0 0
  %397 = vperm.xlu0 %396, %v363
  %v398 = vpop.permute.xlu0 %397
  %401 = vset.pattern.permute.xlu0 0
  %402 = vperm.xlu0 %401, %v364
  %v403 = vpop.permute.xlu0 %402
  %406 = vset.pattern.permute.xlu0 0
  %407 = vperm.xlu0 %406, %v365
  %v408 = vpop.permute.xlu0 %407
  %411 = vset.pattern.permute.xlu0 0
  %412 = vperm.xlu0 %411, %v366
  %v413 = vpop.permute.xlu0 %412
  %416 = vset.pattern.permute.xlu0 0
  %417 = vperm.xlu0 %416, %v367
  %v418 = vpop.permute.xlu0 %417
  %421 = vset.pattern.permute.xlu0 0
  %422 = vperm.xlu0 %421, %v368
  %v423 = vpop.permute.xlu0 %422
  %426 = vset.pattern.permute.xlu0 0
  %427 = vperm.xlu0 %426, %v369
  %v428 = vpop.permute.xlu0 %427
  %431 = vset.pattern.permute.xlu0 0
  %432 = vperm.xlu0 %431, %v370
  %v433 = vpop.permute.xlu0 %432
  %436 = vset.pattern.permute.xlu0 0
  %437 = vperm.xlu0 %436, %v371
  %v438 = vpop.permute.xlu0 %437
  %441 = vset.pattern.permute.xlu0 0
  %442 = vperm.xlu0 %441, %v372
  %v443 = vpop.permute.xlu0 %442
  %446 = vset.pattern.permute.xlu0 0
  %447 = vperm.xlu0 %446, %v373
  %v448 = vpop.permute.xlu0 %447
  %451 = vset.pattern.permute.xlu0 0
  %452 = vperm.xlu0 %451, %v374
  %v453 = vpop.permute.xlu0 %452
  %v471 = vunpack.c.l.b16 %v343
  %v472 = vunpack.c.l.b16 %v344
  %v473 = vunpack.c.l.b16 %v345
  %v474 = vunpack.c.l.b16 %v346
  %v475 = vunpack.c.l.b16 %v347
  %v476 = vunpack.c.l.b16 %v348
  %v477 = vunpack.c.l.b16 %v349
  %v478 = vunpack.c.l.b16 %v350
  %v479 = vunpack.c.l.b16 %v351
  %v480 = vunpack.c.l.b16 %v352
  %v481 = vunpack.c.l.b16 %v353
  %v482 = vunpack.c.l.b16 %v354
  %v483 = vunpack.c.l.b16 %v355
  %v484 = vunpack.c.l.b16 %v356
  %v485 = vunpack.c.l.b16 %v357
  %v486 = vunpack.c.l.b16 %v358
  %v487 = vpack.c.b16 %v472, %v471
  %v488 = vpack.c.b16 %v474, %v473
  %v489 = vpack.c.b16 %v476, %v475
  %v490 = vpack.c.b16 %v478, %v477
  %v491 = vpack.c.b16 %v480, %v479
  %v492 = vpack.c.b16 %v482, %v481
  %v493 = vpack.c.b16 %v484, %v483
  %v494 = vpack.c.b16 %v486, %v485
  %503 = vmatprep.subr.bf16.mxu0 0
  %504 = vmatpush1.bf16.msra.mxu0 %v335
  %505 = vmatprep.subr.bf16.mxu0 0
  %506 = vmatpush1.bf16.msra.mxu0 %v336
  %507 = vmatprep.subr.bf16.mxu0 0
  %508 = vmatpush1.bf16.msra.mxu0 %v337
  %509 = vmatprep.subr.bf16.mxu0 0
  %510 = vmatpush1.bf16.msra.mxu0 %v338
  %511 = vmatprep.subr.bf16.mxu0 0
  %512 = vmatpush1.bf16.msra.mxu0 %v339
  %513 = vmatprep.subr.bf16.mxu0 0
  %514 = vmatpush1.bf16.msra.mxu0 %v340
  %515 = vmatprep.subr.bf16.mxu0 0
  %516 = vmatpush1.bf16.msra.mxu0 %v341
  %517 = vmatprep.subr.bf16.mxu0 0
  %518 = vmatpush1.bf16.msra.mxu0 %v342
  %519 = vmatprep.subr.bf16.mxu0 0
  %520 = vmatpush1.bf16.msra.mxu0 0
  %521 = vmatprep.subr.bf16.mxu0 0
  %522 = vmatpush1.bf16.msra.mxu0 0
  %523 = vmatprep.subr.bf16.mxu0 0
  %524 = vmatpush1.bf16.msra.mxu0 0
  %525 = vmatprep.subr.bf16.mxu0 0
  %526 = vmatpush1.bf16.msra.mxu0 0
  %527 = vmatprep.subr.bf16.mxu0 0
  %528 = vmatpush1.bf16.msra.mxu0 0
  %529 = vmatprep.subr.bf16.mxu0 0
  %530 = vmatpush1.bf16.msra.mxu0 0
  %531 = vmatprep.subr.bf16.mxu0 0
  %532 = vmatpush1.bf16.msra.mxu0 0
  %533 = vmatprep.subr.bf16.mxu0 0
  %534 = vmatpush1.bf16.msra.mxu0 0
  %535 = vmatprep.mubr.bf16.mxu0 0
  %536 = vmatmul.mubr.bf16.gmra.mrb[0].mxu0 %v487
  %v537 = vpop.f32.mrb[0].mxu0
  %v538 = vadd.f32 %v378, %v537
  %v539 = vpop.f32.mrb[0].mxu0
  %v540 = vpop.f32.mrb[0].mxu0
  %v541 = vadd.f32 %v383, %v540
  %v542 = vpop.f32.mrb[0].mxu0
  %543 = vmatprep.mubr.bf16.mxu0 0
  %544 = vmatmul.mubr.bf16.gmra.mrb[0].mxu0 %v488
  %v545 = vpop.f32.mrb[0].mxu0
  %v546 = vadd.f32 %v388, %v545
  %v547 = vpop.f32.mrb[0].mxu0
  %v548 = vpop.f32.mrb[0].mxu0
  %v549 = vadd.f32 %v393, %v548
  %v550 = vpop.f32.mrb[0].mxu0
  %551 = vmatprep.mubr.bf16.mxu0 0
  %552 = vmatmul.mubr.bf16.gmra.mrb[0].mxu0 %v489
  %v553 = vpop.f32.mrb[0].mxu0
  %v554 = vadd.f32 %v398, %v553
  %v555 = vpop.f32.mrb[0].mxu0
  %v556 = vpop.f32.mrb[0].mxu0
  %v557 = vadd.f32 %v403, %v556
  %v558 = vpop.f32.mrb[0].mxu0
  %559 = vmatprep.mubr.bf16.mxu0 0
  %560 = vmatmul.mubr.bf16.gmra.mrb[0].mxu0 %v490
  %v561 = vpop.f32.mrb[0].mxu0
  %v562 = vadd.f32 %v408, %v561
  %v563 = vpop.f32.mrb[0].mxu0
  %v564 = vpop.f32.mrb[0].mxu0
  %v565 = vadd.f32 %v413, %v564
  %v566 = vpop.f32.mrb[0].mxu0
  %567 = vmatprep.mubr.bf16.mxu0 0
  %568 = vmatmul.mubr.bf16.gmra.mrb[0].mxu0 %v491
  %v569 = vpop.f32.mrb[0].mxu0
  %v570 = vadd.f32 %v418, %v569
  %v571 = vpop.f32.mrb[0].mxu0
  %v572 = vpop.f32.mrb[0].mxu0
  %v573 = vadd.f32 %v423, %v572
  %v574 = vpop.f32.mrb[0].mxu0
  %575 = vmatprep.mubr.bf16.mxu0 0
  %576 = vmatmul.mubr.bf16.gmra.mrb[0].mxu0 %v492
  %v577 = vpop.f32.mrb[0].mxu0
  %v578 = vadd.f32 %v428, %v577
  %v579 = vpop.f32.mrb[0].mxu0
  %v580 = vpop.f32.mrb[0].mxu0
  %v581 = vadd.f32 %v433, %v580
  %v582 = vpop.f32.mrb[0].mxu0
  %583 = vmatprep.mubr.bf16.mxu0 0
  %584 = vmatmul.mubr.bf16.gmra.mrb[0].mxu0 %v493
  %v585 = vpop.f32.mrb[0].mxu0
  %v586 = vadd.f32 %v438, %v585
  %v587 = vpop.f32.mrb[0].mxu0
  %v588 = vpop.f32.mrb[0].mxu0
  %v589 = vadd.f32 %v443, %v588
  %v590 = vpop.f32.mrb[0].mxu0
  %591 = vmatprep.mubr.bf16.mxu0 0
  %592 = vmatmul.mubr.bf16.gmra.mrb[0].mxu0 %v494
  %v593 = vpop.f32.mrb[0].mxu0
  %v594 = vadd.f32 %v448, %v593
  %v595 = vpop.f32.mrb[0].mxu0
  %v596 = vpop.f32.mrb[0].mxu0
  %v597 = vadd.f32 %v453, %v596
  %v598 = vpop.f32.mrb[0].mxu0
  %599 = vdwg.mxu0
  %v600 = vmax.f32 %v538, 0.0
  %v601 = vmax.f32 %v541, 0.0
  %v602 = vmax.f32 %v546, 0.0
  %v603 = vmax.f32 %v549, 0.0
  %v604 = vmax.f32 %v554, 0.0
  %v605 = vmax.f32 %v557, 0.0
  %v606 = vmax.f32 %v562, 0.0
  %v607 = vmax.f32 %v565, 0.0
  %v608 = vmax.f32 %v570, 0.0
  %v609 = vmax.f32 %v573, 0.0
  %v610 = vmax.f32 %v578, 0.0
  %v611 = vmax.f32 %v581, 0.0
  %v612 = vmax.f32 %v586, 0.0
  %v613 = vmax.f32 %v589, 0.0
  %v614 = vmax.f32 %v594, 0.0
  %v615 = vmax.f32 %v597, 0.0
  %v616 = vld [vmem:[%s5] sm:$0xff]
  %v617 = vld [vmem:[%s5 + $0x8] sm:$0xff]
  %v618 = vld [vmem:[%s5 + $0x10] sm:$0xff]
  %v619 = vld [vmem:[%s5 + $0x18] sm:$0xff]
  %v620 = vld [vmem:[%s5 + $0x20] sm:$0xff]
  %v621 = vld [vmem:[%s5 + $0x28] sm:$0xff]
  %v622 = vld [vmem:[%s5 + $0x30] sm:$0xff]
  %v623 = vld [vmem:[%s5 + $0x38] sm:$0xff]
  %v624 = vld [vmem:[%s5 + $0x40] sm:$0xff]
  %v625 = vld [vmem:[%s5 + $0x48] sm:$0xff]
  %v626 = vld [vmem:[%s5 + $0x50] sm:$0xff]
  %v627 = vld [vmem:[%s5 + $0x58] sm:$0xff]
  %v628 = vld [vmem:[%s5 + $0x60] sm:$0xff]
  %v629 = vld [vmem:[%s5 + $0x68] sm:$0xff]
  %v630 = vld [vmem:[%s5 + $0x70] sm:$0xff]
  %v631 = vld [vmem:[%s5 + $0x78] sm:$0xff]
  %v632 = vld [vmem:[#allocation2] sm:$0x1]
  %634 = vset.pattern.permute.xlu0 0
  %635 = vperm.xlu0 %634, %v616
  %v636 = vpop.permute.xlu0 %635
  %639 = vset.pattern.permute.xlu0 0
  %640 = vperm.xlu0 %639, %v617
  %v641 = vpop.permute.xlu0 %640
  %644 = vset.pattern.permute.xlu0 0
  %645 = vperm.xlu0 %644, %v618
  %v646 = vpop.permute.xlu0 %645
  %649 = vset.pattern.permute.xlu0 0
  %650 = vperm.xlu0 %649, %v619
  %v651 = vpop.permute.xlu0 %650
  %654 = vset.pattern.permute.xlu0 0
  %655 = vperm.xlu0 %654, %v620
  %v656 = vpop.permute.xlu0 %655
  %659 = vset.pattern.permute.xlu0 0
  %660 = vperm.xlu0 %659, %v621
  %v661 = vpop.permute.xlu0 %660
  %664 = vset.pattern.permute.xlu0 0
  %665 = vperm.xlu0 %664, %v622
  %v666 = vpop.permute.xlu0 %665
  %669 = vset.pattern.permute.xlu0 0
  %670 = vperm.xlu0 %669, %v623
  %v671 = vpop.permute.xlu0 %670
  %674 = vset.pattern.permute.xlu0 0
  %675 = vperm.xlu0 %674, %v624
  %v676 = vpop.permute.xlu0 %675
  %679 = vset.pattern.permute.xlu0 0
  %680 = vperm.xlu0 %679, %v625
  %v681 = vpop.permute.xlu0 %680
  %684 = vset.pattern.permute.xlu0 0
  %685 = vperm.xlu0 %684, %v626
  %v686 = vpop.permute.xlu0 %685
  %689 = vset.pattern.permute.xlu0 0
  %690 = vperm.xlu0 %689, %v627
  %v691 = vpop.permute.xlu0 %690
  %694 = vset.pattern.permute.xlu0 0
  %695 = vperm.xlu0 %694, %v628
  %v696 = vpop.permute.xlu0 %695
  %699 = vset.pattern.permute.xlu0 0
  %700 = vperm.xlu0 %699, %v629
  %v701 = vpop.permute.xlu0 %700
  %704 = vset.pattern.permute.xlu0 0
  %705 = vperm.xlu0 %704, %v630
  %v706 = vpop.permute.xlu0 %705
  %709 = vset.pattern.permute.xlu0 0
  %710 = vperm.xlu0 %709, %v631
  %v711 = vpop.permute.xlu0 %710
  %v713 = vmul.f32 %v600, %v636
  %v714 = vmul.f32 %v601, %v641
  %v715 = vmul.f32 %v602, %v646
  %v716 = vmul.f32 %v603, %v651
  %v717 = vmul.f32 %v604, %v656
  %v718 = vmul.f32 %v605, %v661
  %v719 = vmul.f32 %v606, %v666
  %v720 = vmul.f32 %v607, %v671
  %v721 = vmul.f32 %v608, %v676
  %v722 = vmul.f32 %v609, %v681
  %v723 = vmul.f32 %v610, %v686
  %v724 = vmul.f32 %v611, %v691
  %v725 = vmul.f32 %v612, %v696
  %v726 = vmul.f32 %v613, %v701
  %v727 = vmul.f32 %v614, %v706
  %v728 = vmul.f32 %v615, %v711
  %v729 = vadd.f32 %v713, %v714
  %v730 = vadd.f32 %v729, %v715
  %v731 = vadd.f32 %v730, %v716
  %v732 = vadd.f32 %v731, %v717
  %v733 = vadd.f32 %v732, %v718
  %v734 = vadd.f32 %v733, %v719
  %v735 = vadd.f32 %v734, %v720
  %v736 = vadd.f32 %v735, %v721
  %v737 = vadd.f32 %v736, %v722
  %v738 = vadd.f32 %v737, %v723
  %v739 = vadd.f32 %v738, %v724
  %v740 = vadd.f32 %v739, %v725
  %v741 = vadd.f32 %v740, %v726
  %v742 = vadd.f32 %v741, %v727
  %v743 = vadd.f32 %v742, %v728
  %v744 = vrot.slane %v743, 4
  %v745 = vadd.f32 %v743, %v744
  %v746 = vrot.slane %v745, 2
  %v747 = vadd.f32 %v745, %v746
  %v748 = vrot.slane %v747, 1
  %v749 = vadd.f32 %v747, %v748
  %751 = vset.pattern.permute.xlu0 0
  %752 = vperm.xlu0 %751, %v632
  %v753 = vpop.permute.xlu0 %752
  %v755 = vlaneseq
  %v756 = vshrl.u32 %v755, 7
  %v757 = vsub.s32 0, %v756
  %v758 = vrot.slane %v753, %v757
  %v759 = vadd.f32 %v749, %v758
  %v760 = vxor.u32 %v759, 2147483648
  %v761 = vmul.f32 %v760, 1.442695
  %v762 = vpow.pop %v761
  %v763 = vadd.f32 %v762, 1.0
  %v764 = vrcp.pop %v763
  %v765 = vmul.f32 1.0, %v764
  %766 = vst [vmem:[%s7] sm:$0x1] %v765
  // Predicated region
  $region30: #{_ncf_forward.1} parent=0 // pred_check
    _
  $region31: #{_ncf_forward.1} parent=0 // pred_check_branch
    %768 = sbr.rel (0) target = $region33
  $region32: #{_ncf_forward.1} parent=0 // pred_region
    _
  $region33: #{_ncf_forward.1} parent=0 // pred_fallthru
    _
  // Predicated region
  $region34: #{_ncf_forward.1} parent=0 // pred_check
    _
  $region35: #{_ncf_forward.1} parent=0 // pred_check_branch
    %770 = sbr.rel (0) target = $region37
  $region36: #{_ncf_forward.1} parent=0 // pred_region
    _
  $region37: #{_ncf_forward.1} parent=0 // pred_fallthru
    _

</llo_original>
